<compile_context>
chip_gen: v7x
topology: tpu7x:2x2x1
jax: 0.10.0
libtpu: 0.0.40
codegen_flags: <defaults>
</compile_context>

<pallas_src>
import functools
import math

import jax
import jax.numpy as jnp
from jax.experimental import pallas as pl
from jax.experimental.pallas import tpu as pltpu


def _cdiv(a, b):
    return -(-a // b)


def _round_up(x, m):
    return _cdiv(x, m) * m


def _fold_linear_kernel(x_ref, w_ref, b_ref, o_ref, acc_ref):
    # x_ref: (TM, TK)   folded, lane-dense input tile
    # w_ref: (TK, GN)   block-diagonal shared weight (resident or K-streamed)
    # b_ref: (1, GN)    tiled bias
    # o_ref: (TM, GN)   lane-dense output slab
    # acc_ref: (TM, GN) f32 accumulator (scratch)
    k = pl.program_id(1)

    @pl.when(k == 0)
    def _():
        acc_ref[...] = jnp.zeros_like(acc_ref)

    acc_ref[...] += jnp.dot(
        x_ref[...], w_ref[...], preferred_element_type=jnp.float32
    )

    @pl.when(k == pl.num_programs(1) - 1)
    def _():
        o_ref[...] = (acc_ref[...] + b_ref[...]).astype(o_ref.dtype)


def pack_displacement_params(weight, bias, *, max_fold_flops_per_byte=128.0):
    """One-time packing of nn.Linear(K->N) params for the lane-dense kernel.

    weight: (N, K) in torch nn.Linear layout; bias: (N,).
    Returns (w_block, b_block, G) with w_block: (G*K, G*N) block-diagonal and
    b_block: (1, G*N).  Call once; reuse across steps.
    """
    weight = jnp.asarray(weight)
    bias = jnp.asarray(bias)
    N, K = weight.shape
    isz = jnp.dtype(weight.dtype).itemsize
    G = 128 // math.gcd(N, 128)
    # The fold does G x the mathematically required MXU flops (block-diagonal
    # zeros).  Keep it only while that stays comfortably memory-bound on the
    # slowest-MXU generation (v5e); otherwise fall back to the plain weight.
    if G > 1 and (2.0 * G * K * N) / ((K + N) * isz) > max_fold_flops_per_byte:
        G = 1
    w_t = weight.T  # (K, N)
    w_block = w_t if G == 1 else jnp.kron(jnp.eye(G, dtype=w_t.dtype), w_t)
    b_block = jnp.tile(bias, G).reshape(1, G * N)
    return w_block, b_block, G


@functools.partial(
    jax.jit,
    static_argnames=("G", "tm_rows", "use_kernel", "max_weight_vmem_bytes"),
)
def displacement_prediction_packed(
    data,
    w_block,
    b_block,
    *,
    G,
    tm_rows=4096,
    use_kernel=None,
    max_weight_vmem_bytes=8 << 20,
):
    """data: (batch, ped, K); w_block/b_block/G from pack_displacement_params.
    Returns (batch, ped, N) in data.dtype (f32 accumulation inside)."""
    batch, ped, K = data.shape
    GK, GN = w_block.shape
    assert GK == G * K, "w_block does not match data feature size / G"
    N = GN // G
    M = batch * ped
    dtype = data.dtype
    isz = jnp.dtype(dtype).itemsize

    w_block = w_block.astype(dtype)
    b_block = b_block.astype(dtype)
    x = data.reshape(M, K)

    # ---- small-problem fast path: launch/pad overhead would dominate ----
    if use_kernel is False or (use_kernel is None and M * K * isz < (1 << 20)):
        w_t = w_block[:K, :N]  # top-left block of the block-diagonal == weight.T
        y = jnp.dot(x, w_t, preferred_element_type=jnp.float32)
        y = (y + b_block[0, :N].astype(jnp.float32)).astype(dtype)
        return y.reshape(batch, ped, N)

    # ---- keep the weight VMEM-resident when it fits, else stream along K ----
    w_bytes = GK * GN * isz
    n_k = max(1, _cdiv(w_bytes, max_weight_vmem_bytes))
    if n_k == 1:
        tk, gk_pad = GK, GK
    else:
        tk = _round_up(_cdiv(GK, n_k), 128)
        n_k = _cdiv(GK, tk)
        gk_pad = n_k * tk
        if gk_pad != GK:  # zero-pad the reduction dim (exact arithmetic)
            w_block = jnp.pad(w_block, ((0, gk_pad - GK), (0, 0)))

    # ---- fold G rows into lanes; pad rows only to a multiple of G*8 ----
    m_pad = _round_up(M, G * 8)
    if m_pad != M:
        x = jnp.pad(x, ((0, m_pad - M), (0, 0)))
    mf = m_pad // G
    xf = x.reshape(mf, GK)  # free reshape (row-major contiguous)
    if gk_pad != GK:
        xf = jnp.pad(xf, ((0, 0), (0, gk_pad - GK)))

    # ---- M tile from a VMEM byte budget; prefer an even tile count (v7x) ----
    w_vmem = tk * GN * isz * (1 if n_k == 1 else 2) + GN * isz
    per_row = 2 * tk * isz + 2 * GN * isz + GN * 4  # x dbuf + out dbuf + f32 acc
    tm_cap = max(8, ((40 << 20) - w_vmem) // per_row // 8 * 8)
    tm_target = max(8, min(tm_rows, tm_cap, mf))
    n_m = _cdiv(mf, tm_target)
    if n_m > 1:
        n_m += n_m % 2  # even tile count -> both v7x TensorCores stay busy
    tm = min(mf, _round_up(_cdiv(mf, n_m), 8))
    n_m = _cdiv(mf, tm)  # ragged last M tile handled by Pallas edge masking

    vmem_need = 2 * tm * tk * isz + 2 * tm * GN * isz + tm * GN * 4 + w_vmem
    vmem_limit = int(min(max(vmem_need * 3 // 2, 16 << 20), 48 << 20))

    cost = pl.CostEstimate(
        flops=int(2 * mf * gk_pad * GN),
        transcendentals=0,
        bytes_accessed=int((mf * gk_pad + gk_pad * GN + GN + mf * GN) * isz),
    )

    out = pl.pallas_call(
        _fold_linear_kernel,
        out_shape=jax.ShapeDtypeStruct((mf, GN), dtype),
        grid_spec=pltpu.PrefetchScalarGridSpec(
            num_scalar_prefetch=0,
            grid=(n_m, n_k),
            in_specs=[
                pl.BlockSpec((tm, tk), lambda i, k: (i, k)),  # streamed x tiles
                pl.BlockSpec((tk, GN), lambda i, k: (k, 0)),  # weight (resident/streamed)
                pl.BlockSpec((1, GN), lambda i, k: (0, 0)),   # bias
            ],
            out_specs=pl.BlockSpec((tm, GN), lambda i, k: (i, 0)),
            scratch_shapes=[pltpu.VMEM((tm, GN), jnp.float32)],
        ),
        compiler_params=pltpu.CompilerParams(
            dimension_semantics=("parallel", "arbitrary"),
            vmem_limit_bytes=vmem_limit,
        ),
        cost_estimate=cost,
    )(xf, w_block, b_block)

    out = out.reshape(m_pad, N)[:M]
    return out.reshape(batch, ped, N)


def displacement_prediction(data, weight, bias, **kwargs):
    """Convenience wrapper mirroring the PyTorch module (packs per call).
    Prefer pack_displacement_params() once + displacement_prediction_packed()."""
    w_block, b_block, G = pack_displacement_params(weight, bias)
    return displacement_prediction_packed(data, w_block, b_block, G=G, **kwargs)


def _ref_forward(data, weight, bias):
    # Pure-JAX reference mimicking the PyTorch per-pedestrian loop exactly.
    return jnp.einsum("bpk,nk->bpn", data, weight) + bias[None, None, :]


if __name__ == "__main__":
    batch = 2
    pedestrian_num = 8
    input_size = 32
    output_size = 16

    key = jax.random.PRNGKey(0)
    k_data, k_w, k_b = jax.random.split(key, 3)

    # nn.Linear default init: uniform in [-1/sqrt(in), 1/sqrt(in)].
    bound = 1.0 / math.sqrt(input_size)
    weight = jax.random.uniform(
        k_w, (output_size, input_size), jnp.float32, minval=-bound, maxval=bound
    )
    bias = jax.random.uniform(
        k_b, (output_size,), jnp.float32, minval=-bound, maxval=bound
    )
    data = jax.random.normal(
        k_data, (batch, pedestrian_num, input_size), jnp.float32
    )

    ref = _ref_forward(data, weight, bias)

    # One-time parameter packing (hoisted out of the per-call path).
    w_block, b_block, G = pack_displacement_params(weight, bias)

    # 1) Pallas kernel path (forced; weight VMEM-resident, single K step).
    out = displacement_prediction_packed(
        data, w_block, b_block, G=G, use_kernel=True
    )
    out = jax.block_until_ready(out)
    assert out.shape == (batch, pedestrian_num, output_size)
    assert jnp.allclose(out, ref, atol=1e-5, rtol=1e-5)

    # 2) Pallas kernel path with the K-streaming reduction axis forced on.
    out_k = displacement_prediction_packed(
        data, w_block, b_block, G=G, use_kernel=True,
        max_weight_vmem_bytes=64 << 10,
    )
    out_k = jax.block_until_ready(out_k)
    assert jnp.allclose(out_k, ref, atol=1e-5, rtol=1e-5)

    # 3) Default auto path (tiny problem -> XLA fast path, no Pallas launch).
    out_auto = jax.block_until_ready(displacement_prediction(data, weight, bias))
    assert jnp.allclose(out_auto, ref, atol=1e-5, rtol=1e-5)

    print("KERNEL_OK")
</pallas_src>

<mosaic_0001>
module attributes {stable_mosaic.version = 11 : i64} {
  func.func @_fold_linear_kernel(%arg0: i32, %arg1: i32, %arg2: memref<8x256xf32, #tpu.memory_space<vmem>>, %arg3: memref<256x128xf32, #tpu.memory_space<vmem>>, %arg4: memref<1x128xf32, #tpu.memory_space<vmem>>, %arg5: memref<8x128xf32, #tpu.memory_space<vmem>>, %arg6: memref<8x128xf32, #tpu.memory_space<vmem>>) attributes {dimension_semantics = [#tpu.dimension_semantics<parallel>, #tpu.dimension_semantics<arbitrary>], iteration_bounds = array<i64: 1, 1>, scalar_prefetch = 0 : i64, scratch_operands = 1 : i64, tpu.core_type = #tpu.core_type<tc>, window_params = [{transform_indices = @transform_0, window_bounds = array<i64: 8, 256>}, {transform_indices = @transform_1, window_bounds = array<i64: 256, 128>}, {pipeline_mode = #tpu.pipeline_mode<synchronous>, transform_indices = @transform_2, window_bounds = array<i64: 1, 128>}, {transform_indices = @transform_3, window_bounds = array<i64: 8, 128>}]} {
    %c0_i32 = arith.constant 0 : i32
    %0 = arith.cmpi eq, %arg1, %c0_i32 : i32
    %1 = arith.extui %0 : i1 to i32
    %c0_i32_0 = arith.constant 0 : i32
    %2 = arith.cmpi ne, %1, %c0_i32_0 : i32
    scf.if %2 {
      %cst_10 = arith.constant 0.000000e+00 : f32
      %12 = vector.broadcast %cst_10 : f32 to vector<8x128xf32>
      %c0_11 = arith.constant 0 : index
      %c0_12 = arith.constant 0 : index
      %13 = vector.load %arg6[%c0_11, %c0_12] : memref<8x128xf32, #tpu.memory_space<vmem>>, vector<8x128xf32>
      tpu.vector_store %arg6[%c0_11, %c0_12], %12 {strides = array<i32>} : memref<8x128xf32, #tpu.memory_space<vmem>>, vector<8x128xf32>,
    } else {
    }
    %c0 = arith.constant 0 : index
    %c0_1 = arith.constant 0 : index
    %3 = vector.load %arg6[%c0, %c0_1] : memref<8x128xf32, #tpu.memory_space<vmem>>, vector<8x128xf32>
    %c0_2 = arith.constant 0 : index
    %c0_3 = arith.constant 0 : index
    %4 = vector.load %arg2[%c0_2, %c0_3] : memref<8x256xf32, #tpu.memory_space<vmem>>, vector<8x256xf32>
    %c0_4 = arith.constant 0 : index
    %c0_5 = arith.constant 0 : index
    %5 = vector.load %arg3[%c0_4, %c0_5] : memref<256x128xf32, #tpu.memory_space<vmem>>, vector<256x128xf32>
    %cst = arith.constant dense<0.000000e+00> : vector<8x128xf32>
    %6 = tpu.matmul %4, %5, %cst {dimension_numbers = #tpu.dot_dimension_numbers<[1], [0], [0], [1], [0, 0, 1, 1], [], []>} : vector<8x256xf32>, vector<256x128xf32>, vector<8x128xf32> -> vector<8x128xf32>
    %7 = arith.addf %3, %6 : vector<8x128xf32>
    %c0_6 = arith.constant 0 : index
    %c0_7 = arith.constant 0 : index
    %8 = vector.load %arg6[%c0_6, %c0_7] : memref<8x128xf32, #tpu.memory_space<vmem>>, vector<8x128xf32>
    tpu.vector_store %arg6[%c0_6, %c0_7], %7 {strides = array<i32>} : memref<8x128xf32, #tpu.memory_space<vmem>>, vector<8x128xf32>,
    %c0_i32_8 = arith.constant 0 : i32
    %9 = arith.cmpi eq, %arg1, %c0_i32_8 : i32
    %10 = arith.extui %9 : i1 to i32
    %c0_i32_9 = arith.constant 0 : i32
    %11 = arith.cmpi ne, %10, %c0_i32_9 : i32
    scf.if %11 {
      %c0_10 = arith.constant 0 : index
      %c0_11 = arith.constant 0 : index
      %12 = vector.load %arg6[%c0_10, %c0_11] : memref<8x128xf32, #tpu.memory_space<vmem>>, vector<8x128xf32>
      %c0_12 = arith.constant 0 : index
      %c0_13 = arith.constant 0 : index
      %13 = vector.load %arg4[%c0_12, %c0_13] : memref<1x128xf32, #tpu.memory_space<vmem>>, vector<1x128xf32>
      %14 = vector.broadcast %13 : vector<1x128xf32> to vector<8x128xf32>
      %15 = arith.addf %12, %14 : vector<8x128xf32>
      %c0_14 = arith.constant 0 : index
      %c0_15 = arith.constant 0 : index
      %16 = vector.load %arg5[%c0_14, %c0_15] : memref<8x128xf32, #tpu.memory_space<vmem>>, vector<8x128xf32>
      tpu.vector_store %arg5[%c0_14, %c0_15], %15 {strides = array<i32>} : memref<8x128xf32, #tpu.memory_space<vmem>>, vector<8x128xf32>,
    } else {
    }
    return
  }
  func.func @transform_0(%arg0: i32, %arg1: i32) -> (i32, i32) {
    %c0_i32 = arith.constant 0 : i32
    return %arg0, %arg1 : i32, i32
  }
  func.func @transform_1(%arg0: i32, %arg1: i32) -> (i32, i32) {
    %c0_i32 = arith.constant 0 : i32
    %c0_i32_0 = arith.constant 0 : i32
    return %arg1, %c0_i32 : i32, i32
  }
  func.func @transform_2(%arg0: i32, %arg1: i32) -> (i32, i32) {
    %c0_i32 = arith.constant 0 : i32
    %c0_i32_0 = arith.constant 0 : i32
    %c0_i32_1 = arith.constant 0 : i32
    return %c0_i32, %c0_i32_0 : i32, i32
  }
  func.func @transform_3(%arg0: i32, %arg1: i32) -> (i32, i32) {
    %c0_i32 = arith.constant 0 : i32
    %c0_i32_0 = arith.constant 0 : i32
    return %arg0, %c0_i32 : i32, i32
  }
}

</mosaic_0001>

<llo_original>
// kernel: displacement_prediction_packed.1
$region0: #{displacement_prediction_packed.1}
  #allocation0 [shape = 'u32[]', space=smem, size = 0x4, offset = 0x4, fixed_abs, tag = 'smem constant byte address 0x4 - core index']
  #allocation1 [shape = 'u32[144,128]{1,0:T(1,128)}', space=vmem, size = 0x12000, scoped, tag = 'internal scratch']
  #allocation2 [shape = 'f32[8,128]{1,0:T(8,128)}', space=vmem, size = 0x1000, scoped, tag = 'scratch operand']
  %s0 = inlined_call_operand.vmem [shape: f32[8,256], index: 0, kind: input, shape index: {}]
  %s1 = inlined_call_operand.hbm [shape: f32[256,128], index: 1, kind: input, shape index: {}]
  %s2 = inlined_call_operand.vmem [shape: f32[1,128], index: 2, kind: input, shape index: {}]
  %s3 = inlined_call_operand.vmem [shape: f32[8,128], index: 3, kind: output, shape index: {}]
  %s4 = sld [smem:[#allocation0]]
  $region34: #{displacement_prediction_packed.1} parent=0
    _
  %s6 = ssub.s32 1, %s4
  %s7 = scalar_select 0, %s6, %s4
  $region1: #{displacement_prediction_packed.1} parent=0
    #allocation3 [shape = 'u8[131072]{0}', space=vmem, size = 0x20000, scoped, tag = 'input window, operand 1, single buffered']
    #allocation4 [shape = 's32[1]{0}', space=sflag, size = 0x4, scoped, tag = 'scoped memory for displacement_prediction_packed.1']
    %8 = vsyncpa [#allocation4], 0
    // Predicated region
    $region2: #{displacement_prediction_packed.1} parent=1 // pred_check
      _
    $region3: #{displacement_prediction_packed.1} parent=1 // pred_check_branch
      %10 = sbr.rel (0) target = $region5
    $region4: #{displacement_prediction_packed.1} parent=1 // pred_region
      _
    $region5: #{displacement_prediction_packed.1} parent=1 // pred_fallthru
      _
    // Predicated region
    $region6: #{displacement_prediction_packed.1} parent=1 // pred_check
      _
    $region7: #{displacement_prediction_packed.1} parent=1 // pred_check_branch
      %12 = sbr.rel (0) target = $region9
    $region8: #{displacement_prediction_packed.1} parent=1 // pred_region
      %s14 = ssub.s32 4096, 4096
      %15 = vsyncadd [#allocation4], %s14
      %s16 = sshll.u32 [#allocation3], 4
      %s17 = int_to_ptr.vmem [resolvable:$true] %s16
      %22 = dma.hbm_to_vmem [thread:$0]  %s1, 4096, %s17, [#allocation4], 128, 128, 8
    $region9: #{displacement_prediction_packed.1} parent=1 // pred_fallthru
      _
    // Predicated region
    $region10: #{displacement_prediction_packed.1} parent=1 // pred_check
      _
    $region11: #{displacement_prediction_packed.1} parent=1 // pred_check_branch
      %24 = sbr.rel (0) target = $region13
    $region12: #{displacement_prediction_packed.1} parent=1 // pred_region
      _
    $region13: #{displacement_prediction_packed.1} parent=1 // pred_fallthru
      _
    // Predicated region
    $region14: #{displacement_prediction_packed.1} parent=1 // pred_check
      _
    $region15: #{displacement_prediction_packed.1} parent=1 // pred_check_branch
      %26 = sbr.rel (0) target = $region17
    $region16: #{displacement_prediction_packed.1} parent=1 // pred_region
      %27 = dma.done [#allocation4], 4096
    $region17: #{displacement_prediction_packed.1} parent=1 // pred_fallthru
      _
    %p28 = scmp.eq.s32.totalorder 0, 0
    // Predicated region
    $region18: #{displacement_prediction_packed.1} parent=1 // pred_check
      %p29 = pneg %p28
    $region19: #{displacement_prediction_packed.1} parent=1 // pred_check_branch
      %31 = sbr.rel (%p29) target = $region21
    $region20: #{displacement_prediction_packed.1} parent=1 // pred_region
      %32 = vst [vmem:[#allocation2] sm:$0xff] 0.0
    $region21: #{displacement_prediction_packed.1} parent=1 // pred_fallthru
      _
    %v33 = vld [vmem:[#allocation2] sm:$0xff]
    %v34 = vld [vmem:[%s0] sm:$0xff]
    %v35 = vld [vmem:[%s0 + $0x8] sm:$0xff]
    %v36 = vld [vmem:[#allocation3] sm:$0xff]
    %v37 = vld [vmem:[#allocation3 + $0x8] sm:$0xff]
    %v38 = vld [vmem:[#allocation3 + $0x10] sm:$0xff]
    %v39 = vld [vmem:[#allocation3 + $0x18] sm:$0xff]
    %v40 = vld [vmem:[#allocation3 + $0x20] sm:$0xff]
    %v41 = vld [vmem:[#allocation3 + $0x28] sm:$0xff]
    %v42 = vld [vmem:[#allocation3 + $0x30] sm:$0xff]
    %v43 = vld [vmem:[#allocation3 + $0x38] sm:$0xff]
    %v44 = vld [vmem:[#allocation3 + $0x40] sm:$0xff]
    %v45 = vld [vmem:[#allocation3 + $0x48] sm:$0xff]
    %v46 = vld [vmem:[#allocation3 + $0x50] sm:$0xff]
    %v47 = vld [vmem:[#allocation3 + $0x58] sm:$0xff]
    %v48 = vld [vmem:[#allocation3 + $0x60] sm:$0xff]
    %v49 = vld [vmem:[#allocation3 + $0x68] sm:$0xff]
    %v50 = vld [vmem:[#allocation3 + $0x70] sm:$0xff]
    %v51 = vld [vmem:[#allocation3 + $0x78] sm:$0xff]
    %v52 = vld [vmem:[#allocation3 + $0x80] sm:$0xff]
    %v53 = vld [vmem:[#allocation3 + $0x88] sm:$0xff]
    %v54 = vld [vmem:[#allocation3 + $0x90] sm:$0xff]
    %v55 = vld [vmem:[#allocation3 + $0x98] sm:$0xff]
    %v56 = vld [vmem:[#allocation3 + $0xa0] sm:$0xff]
    %v57 = vld [vmem:[#allocation3 + $0xa8] sm:$0xff]
    %v58 = vld [vmem:[#allocation3 + $0xb0] sm:$0xff]
    %v59 = vld [vmem:[#allocation3 + $0xb8] sm:$0xff]
    %v60 = vld [vmem:[#allocation3 + $0xc0] sm:$0xff]
    %v61 = vld [vmem:[#allocation3 + $0xc8] sm:$0xff]
    %v62 = vld [vmem:[#allocation3 + $0xd0] sm:$0xff]
    %v63 = vld [vmem:[#allocation3 + $0xd8] sm:$0xff]
    %v64 = vld [vmem:[#allocation3 + $0xe0] sm:$0xff]
    %v65 = vld [vmem:[#allocation3 + $0xe8] sm:$0xff]
    %v66 = vld [vmem:[#allocation3 + $0xf0] sm:$0xff]
    %v67 = vld [vmem:[#allocation3 + $0xf8] sm:$0xff]
    %68 = vmatprep.subr.mxu0 0.0
    %69 = vmatpush1.msra.mxu0 %v36
    %70 = vmatprep.subr.mxu0 0.0
    %71 = vmatpush1.msra.mxu0 %v37
    %72 = vmatprep.subr.mxu0 0.0
    %73 = vmatpush1.msra.mxu0 %v38
    %74 = vmatprep.subr.mxu0 0.0
    %75 = vmatpush1.msra.mxu0 %v39
    %76 = vmatprep.subr.mxu0 0.0
    %77 = vmatpush1.msra.mxu0 %v40
    %78 = vmatprep.subr.mxu0 0.0
    %79 = vmatpush1.msra.mxu0 %v41
    %80 = vmatprep.subr.mxu0 0.0
    %81 = vmatpush1.msra.mxu0 %v42
    %82 = vmatprep.subr.mxu0 0.0
    %83 = vmatpush1.msra.mxu0 %v43
    %84 = vmatprep.subr.mxu0 0.0
    %85 = vmatpush1.msra.mxu0 %v44
    %86 = vmatprep.subr.mxu0 0.0
    %87 = vmatpush1.msra.mxu0 %v45
    %88 = vmatprep.subr.mxu0 0.0
    %89 = vmatpush1.msra.mxu0 %v46
    %90 = vmatprep.subr.mxu0 0.0
    %91 = vmatpush1.msra.mxu0 %v47
    %92 = vmatprep.subr.mxu0 0.0
    %93 = vmatpush1.msra.mxu0 %v48
    %94 = vmatprep.subr.mxu0 0.0
    %95 = vmatpush1.msra.mxu0 %v49
    %96 = vmatprep.subr.mxu0 0.0
    %97 = vmatpush1.msra.mxu0 %v50
    %98 = vmatprep.subr.mxu0 0.0
    %99 = vmatpush1.msra.mxu0 %v51
    %100 = vmatprep.subr.mxu0 0.0
    %101 = vmatpush1.msra.mxu0 %v52
    %102 = vmatprep.subr.mxu0 0.0
    %103 = vmatpush1.msra.mxu0 %v53
    %104 = vmatprep.subr.mxu0 0.0
    %105 = vmatpush1.msra.mxu0 %v54
    %106 = vmatprep.subr.mxu0 0.0
    %107 = vmatpush1.msra.mxu0 %v55
    %108 = vmatprep.subr.mxu0 0.0
    %109 = vmatpush1.msra.mxu0 %v56
    %110 = vmatprep.subr.mxu0 0.0
    %111 = vmatpush1.msra.mxu0 %v57
    %112 = vmatprep.subr.mxu0 0.0
    %113 = vmatpush1.msra.mxu0 %v58
    %114 = vmatprep.subr.mxu0 0.0
    %115 = vmatpush1.msra.mxu0 %v59
    %116 = vmatprep.subr.mxu0 0.0
    %117 = vmatpush1.msra.mxu0 %v60
    %118 = vmatprep.subr.mxu0 0.0
    %119 = vmatpush1.msra.mxu0 %v61
    %120 = vmatprep.subr.mxu0 0.0
    %121 = vmatpush1.msra.mxu0 %v62
    %122 = vmatprep.subr.mxu0 0.0
    %123 = vmatpush1.msra.mxu0 %v63
    %124 = vmatprep.subr.mxu0 0.0
    %125 = vmatpush1.msra.mxu0 %v64
    %126 = vmatprep.subr.mxu0 0.0
    %127 = vmatpush1.msra.mxu0 %v65
    %128 = vmatprep.subr.mxu0 0.0
    %129 = vmatpush1.msra.mxu0 %v66
    %130 = vmatprep.subr.mxu0 0.0
    %131 = vmatpush1.msra.mxu0 %v67
    %132 = vmatprep.mubr.f32.mxu0 %v35
    %133 = vmatmul.mubr.f32.gmra.mrb[0].mxu0 %v34
    %v134 = vpop.f32.mrb[0].mxu0
    %v135 = vadd.f32 0.0, %v134
    %v136 = vpop.f32.mrb[0].mxu0
    %137 = vdwg.mxu0
    %v138 = vadd.f32 %v33, %v135
    %139 = vst [vmem:[#allocation2] sm:$0xff] %v138
    // Predicated region
    $region22: #{displacement_prediction_packed.1} parent=1 // pred_check
      %p140 = pneg %p28
    $region23: #{displacement_prediction_packed.1} parent=1 // pred_check_branch
      %142 = sbr.rel (%p140) target = $region25
    $region24: #{displacement_prediction_packed.1} parent=1 // pred_region
      %v143 = vld [vmem:[#allocation2] sm:$0xff]
      %v144 = vld [vmem:[%s2] sm:$0x1]
      %v146 = vlaneseq
      %v147 = vshrl.u32 %v146, 7
      %v148 = vsub.s32 0, %v147
      %v149 = vrot.slane %v144, %v148
      %v151 = vadd.f32 %v143, %v149
      %152 = vst [vmem:[%s3] sm:$0xff] %v151
    $region25: #{displacement_prediction_packed.1} parent=1 // pred_fallthru
      _
    // Predicated region
    $region26: #{displacement_prediction_packed.1} parent=1 // pred_check
      _
    $region27: #{displacement_prediction_packed.1} parent=1 // pred_check_branch
      %154 = sbr.rel (0) target = $region29
    $region28: #{displacement_prediction_packed.1} parent=1 // pred_region
      _
    $region29: #{displacement_prediction_packed.1} parent=1 // pred_fallthru
      _
    // Predicated region
    $region30: #{displacement_prediction_packed.1} parent=1 // pred_check
      _
    $region31: #{displacement_prediction_packed.1} parent=1 // pred_check_branch
      %156 = sbr.rel (0) target = $region33
    $region32: #{displacement_prediction_packed.1} parent=1 // pred_region
      _
    $region33: #{displacement_prediction_packed.1} parent=1 // pred_fallthru
      _
    %157 = vsyncpa [#allocation4], 1

</llo_original>
